<compile_context>
chip_gen: v7x
topology: tpu7x:2x2x1
jax: 0.10.0
libtpu: 0.0.40
codegen_flags: <defaults>
</compile_context>

<pallas_src>
import jax
import jax.numpy as jnp
from jax.experimental import pallas as pl
from jax.experimental.pallas import tpu as pltpu


def _net_kernel(x_ref, v_ref, b_ref, o_ref):
    # x_ref : (TB, F)  input tile, native dtype (f32 / bf16 / ...)
    # v_ref : (1, F)   fused weight |W| * fc1_w (f32), resident across all grid steps
    # b_ref : (1, 1)   fc1 bias (SMEM scalar)
    # o_ref : (TB, 1)  output tile (f32)
    x = x_ref[...].astype(jnp.float32)                      # upcast after load, accumulate in f32
    prod = x * v_ref[...]                                   # single VPU mul over the tile
    o_ref[...] = jnp.sum(prod, axis=1, keepdims=True) + b_ref[0, 0]


def _pick_batch_tile(B, F, itemsize):
    """Largest 8-aligned batch tile keeping one x buffer ~<= 4 MiB (x2 for double buffer)."""
    per_buffer_budget = 4 * 1024 * 1024
    tb = per_buffer_budget // max(1, F * itemsize)
    tb = max(8, (tb // 8) * 8)
    tb = min(tb, 512)
    if B <= tb:
        return B          # full batch fits in one tile (block == full array dim is legal)
    return tb


def net_forward(x, W, fc1_w, fc1_b):
    """x: (B, num_tf, num_peak); W: (num_tf, num_peak); fc1_w: (1, num_tf*num_peak); fc1_b: (1,)."""
    B, num_tf, num_peak = x.shape
    F = num_tf * num_peak

    # Row-major flatten matches torch .reshape(B, -1); keep x's native dtype (no f32 copy).
    x_flat = x.reshape(B, F)

    # Fuse |W| and the fc1 weight row into a single f32 weight vector (tiny host-side op).
    v = (jnp.abs(W).astype(jnp.float32)
         * fc1_w.reshape(num_tf, num_peak).astype(jnp.float32)).reshape(1, F)
    bias = fc1_b.reshape(1, 1).astype(jnp.float32)

    TB = _pick_batch_tile(B, F, jnp.dtype(x_flat.dtype).itemsize)
    grid = (pl.cdiv(B, TB),)

    out = pl.pallas_call(
        _net_kernel,
        out_shape=jax.ShapeDtypeStruct((B, 1), jnp.float32),
        grid=grid,
        in_specs=[
            pl.BlockSpec((TB, F), lambda i: (i, 0)),                     # x tile (pipelined)
            pl.BlockSpec((1, F), lambda i: (0, 0)),                      # fused weight (resident)
            pl.BlockSpec((1, 1), lambda i: (0, 0),
                         memory_space=pltpu.SMEM),                       # bias scalar
        ],
        out_specs=pl.BlockSpec((TB, 1), lambda i: (i, 0)),
        compiler_params=pltpu.CompilerParams(
            dimension_semantics=("parallel",),                           # shard batch across TCs (v7x)
        ),
    )(x_flat, v, bias)
    return out


def reference_forward(x, W, fc1_w, fc1_b):
    B = x.shape[0]
    xw = x.astype(jnp.float32) * jnp.abs(W.astype(jnp.float32))[None, :, :]
    xf = xw.reshape(B, -1)
    return xf @ fc1_w.astype(jnp.float32).T + fc1_b.astype(jnp.float32)


if __name__ == "__main__":
    # Small shapes consistent with the module: batch=2, num_tf=4, num_peak=16.
    B, num_tf, num_peak = 2, 4, 16
    key = jax.random.PRNGKey(0)
    kx, kw, kfw, kfb = jax.random.split(key, 4)

    x = jax.random.normal(kx, (B, num_tf, num_peak), dtype=jnp.float32)
    # Deterministic parameter init (synthetic "precomputed matrix" W and Linear params).
    W = jax.random.normal(kw, (num_tf, num_peak), dtype=jnp.float32)
    fan_in = num_tf * num_peak
    bound = 1.0 / (fan_in ** 0.5)
    fc1_w = jax.random.uniform(kfw, (1, fan_in), minval=-bound, maxval=bound,
                               dtype=jnp.float32)
    fc1_b = jax.random.uniform(kfb, (1,), minval=-bound, maxval=bound,
                               dtype=jnp.float32)

    out = net_forward(x, W, fc1_w, fc1_b)
    out = jax.block_until_ready(out)

    ref = reference_forward(x, W, fc1_w, fc1_b)
    assert out.shape == (B, 1), out.shape
    assert jnp.allclose(out, ref, atol=1e-5, rtol=1e-5), (out, ref)

    print("KERNEL_OK")
</pallas_src>

<mosaic_0001>
module attributes {stable_mosaic.version = 11 : i64} {
  func.func @_net_kernel(%arg0: i32, %arg1: memref<2x64xf32, #tpu.memory_space<vmem>>, %arg2: memref<1x64xf32, #tpu.memory_space<vmem>>, %arg3: memref<1x1xf32, #tpu.memory_space<smem>>, %arg4: memref<2x1xf32, #tpu.memory_space<vmem>>) attributes {dimension_semantics = [#tpu.dimension_semantics<parallel>], iteration_bounds = array<i64: 1>, scalar_prefetch = 0 : i64, scratch_operands = 0 : i64, tpu.core_type = #tpu.core_type<tc>, window_params = [{transform_indices = @transform_0, window_bounds = array<i64: 2, 64>}, {pipeline_mode = #tpu.pipeline_mode<synchronous>, transform_indices = @transform_1, window_bounds = array<i64: 1, 64>}, {transform_indices = @transform_2, window_bounds = array<i64: 1, 1>}, {transform_indices = @transform_3, window_bounds = array<i64: 2, 1>}]} {
    %c0 = arith.constant 0 : index
    %c0_0 = arith.constant 0 : index
    %0 = vector.load %arg1[%c0, %c0_0] : memref<2x64xf32, #tpu.memory_space<vmem>>, vector<2x64xf32>
    %c0_1 = arith.constant 0 : index
    %c0_2 = arith.constant 0 : index
    %1 = vector.load %arg2[%c0_1, %c0_2] : memref<1x64xf32, #tpu.memory_space<vmem>>, vector<1x64xf32>
    %2 = vector.broadcast %1 : vector<1x64xf32> to vector<2x64xf32>
    %3 = arith.mulf %0, %2 : vector<2x64xf32>
    %cst = arith.constant dense<0.000000e+00> : vector<2xf32>
    %4 = vector.multi_reduction <add>, %3, %cst [1] : vector<2x64xf32> to vector<2xf32>
    %5 = vector.shape_cast %4 : vector<2xf32> to vector<2x1xf32>
    %c0_3 = arith.constant 0 : index
    %c0_4 = arith.constant 0 : index
    %6 = memref.load %arg3[%c0_3, %c0_4] : memref<1x1xf32, #tpu.memory_space<smem>>
    %7 = vector.broadcast %6 : f32 to vector<2x1xf32>
    %8 = arith.addf %5, %7 : vector<2x1xf32>
    %c0_5 = arith.constant 0 : index
    %c0_6 = arith.constant 0 : index
    %9 = vector.load %arg4[%c0_5, %c0_6] : memref<2x1xf32, #tpu.memory_space<vmem>>, vector<2x1xf32>
    tpu.vector_store %arg4[%c0_5, %c0_6], %8 {strides = array<i32>} : memref<2x1xf32, #tpu.memory_space<vmem>>, vector<2x1xf32>,
    return
  }
  func.func @transform_0(%arg0: i32) -> (i32, i32) {
    %c0_i32 = arith.constant 0 : i32
    %c0_i32_0 = arith.constant 0 : i32
    return %arg0, %c0_i32 : i32, i32
  }
  func.func @transform_1(%arg0: i32) -> (i32, i32) {
    %c0_i32 = arith.constant 0 : i32
    %c0_i32_0 = arith.constant 0 : i32
    %c0_i32_1 = arith.constant 0 : i32
    return %c0_i32, %c0_i32_0 : i32, i32
  }
  func.func @transform_2(%arg0: i32) -> (i32, i32) {
    %c0_i32 = arith.constant 0 : i32
    %c0_i32_0 = arith.constant 0 : i32
    %c0_i32_1 = arith.constant 0 : i32
    return %c0_i32, %c0_i32_0 : i32, i32
  }
  func.func @transform_3(%arg0: i32) -> (i32, i32) {
    %c0_i32 = arith.constant 0 : i32
    %c0_i32_0 = arith.constant 0 : i32
    return %arg0, %c0_i32 : i32, i32
  }
}

</mosaic_0001>

<llo_original>
// kernel: tpu_custom_call.1
$region0: #{tpu_custom_call.1}
  #allocation0 [shape = 'u32[]', space=smem, size = 0x4, offset = 0x4, fixed_abs, tag = 'smem constant byte address 0x4 - core index']
  #allocation1 [shape = 'u32[144,128]{1,0:T(1,128)}', space=vmem, size = 0x12000, scoped, tag = 'internal scratch']
  #allocation2 [shape = 'f32[1,1]{1,0:T(1,128)S(6)}', space=smem, size = 0x200, scoped, tag = 'scoped memory for tpu_custom_call.1']
  %s0 = inlined_call_operand.vmem [shape: f32[2,64], index: 0, kind: input, shape index: {}]
  %s1 = inlined_call_operand.vmem [shape: f32[1,64], index: 1, kind: input, shape index: {}]
  %s2 = inlined_call_operand.<no memory space> [shape: f32[1,1], index: 2, kind: input, shape index: {}]
  %s3 = inlined_call_operand.vmem [shape: f32[2,1], index: 3, kind: output, shape index: {}]
  %s4 = sld [smem:[#allocation0]]
  $region22: #{tpu_custom_call.1} parent=0
    _
  %s6 = ssub.s32 1, %s4
  %s7 = scalar_select 0, %s6, %s4
  %8 = sst [smem:[#allocation2]] %s2
  // Predicated region
  $region2: #{tpu_custom_call.1} parent=0 // pred_check
    _
  $region3: #{tpu_custom_call.1} parent=0 // pred_check_branch
    %10 = sbr.rel (0) target = $region5
  $region4: #{tpu_custom_call.1} parent=0 // pred_region
    _
  $region5: #{tpu_custom_call.1} parent=0 // pred_fallthru
    _
  // Predicated region
  $region6: #{tpu_custom_call.1} parent=0 // pred_check
    _
  $region7: #{tpu_custom_call.1} parent=0 // pred_check_branch
    %12 = sbr.rel (0) target = $region9
  $region8: #{tpu_custom_call.1} parent=0 // pred_region
    _
  $region9: #{tpu_custom_call.1} parent=0 // pred_fallthru
    _
  // Predicated region
  $region10: #{tpu_custom_call.1} parent=0 // pred_check
    _
  $region11: #{tpu_custom_call.1} parent=0 // pred_check_branch
    %14 = sbr.rel (0) target = $region13
  $region12: #{tpu_custom_call.1} parent=0 // pred_region
    _
  $region13: #{tpu_custom_call.1} parent=0 // pred_fallthru
    _
  %v15 = vld [vmem:[%s0] sm:$0x3]
  %v16 = vld [vmem:[%s1] sm:$0x1]
  %v18 = vlaneseq
  %v19 = vshrl.u32 %v18, 7
  %v20 = vsub.s32 0, %v19
  %v21 = vrot.slane %v16, %v20
  %v23 = vmul.f32 %v15, %v21
  %vm24 = vcmask 517120
  %v25 = vsel %vm24, %v23, 0.0
  %26 = vadd.xlane.f32.xlu0 %v25
  %v27 = vpop.xlane.xlu0 %26
  %s28 = sld [smem:[#allocation2]]
  %v29 = vstv %s28
  %v30 = vadd.f32 %v27, %v29
  %vm31 = vcmask 1024
  %32 = vst.msk [vmem:[%s3] sm:$0x3] %vm31, %v30
  // Predicated region
  $region14: #{tpu_custom_call.1} parent=0 // pred_check
    _
  $region15: #{tpu_custom_call.1} parent=0 // pred_check_branch
    %34 = sbr.rel (0) target = $region17
  $region16: #{tpu_custom_call.1} parent=0 // pred_region
    _
  $region17: #{tpu_custom_call.1} parent=0 // pred_fallthru
    _
  // Predicated region
  $region18: #{tpu_custom_call.1} parent=0 // pred_check
    _
  $region19: #{tpu_custom_call.1} parent=0 // pred_check_branch
    %36 = sbr.rel (0) target = $region21
  $region20: #{tpu_custom_call.1} parent=0 // pred_region
    _
  $region21: #{tpu_custom_call.1} parent=0 // pred_fallthru
    _

</llo_original>
